<compile_context>
chip_gen: v7x
topology: tpu7x:2x2x1
jax: 0.10.0
libtpu: 0.0.40
codegen_flags: <defaults>
</compile_context>

<pallas_src>
import jax
import jax.numpy as jnp
from jax.experimental import pallas as pl
from jax.experimental.pallas import tpu as pltpu

EMBED_DIM = 256                 # as in the PyTorch module
H1, H2, H3, H4 = 256, 128, 64, 1
HP = 128                        # lane-padded width for fc3 outputs


def _round_up(x, m):
    return (x + m - 1) // m * m


def _choose_tile(batch, block_b):
    """Multiple-of-8 batch tile, capped so that (on v7x) the 'parallel' batch
    axis yields at least two tiles whenever the batch is large enough to split."""
    tb = min(block_b, _round_up(batch, 8))
    if batch > 8:
        tb = min(tb, _round_up(pl.cdiv(batch, 2), 8))
    return max(tb, 8)


def _ncf_mlp_kernel(ue_ref, je_ref,
                    w1u_ref, w1j_ref, b1_ref,
                    w2_ref, b2_ref,
                    w3_ref, b3_ref,
                    w4_ref, b4_ref,
                    o_ref):
    """4-layer MLP for one batch tile.

    ue/je: [TB, 256] bf16.  Matmul weights bf16 [in, out]; biases f32 [1, out].
    fc3 is zero-padded to 128 output lanes (zero weight cols + zero bias +
    ReLU(0)=0 keep the padded lanes exactly zero).  fc4 is a VPU multiply with
    a zero-padded f32 [1, 128] weight row followed by a cross-lane reduction,
    so only the single useful column is computed and stored.
    """
    f32 = jnp.float32
    bf16 = jnp.bfloat16

    # fc1 as a split matmul (replaces concat(user_emb, joke_emb) @ w1).
    h = (jnp.dot(ue_ref[...], w1u_ref[...], preferred_element_type=f32)
         + jnp.dot(je_ref[...], w1j_ref[...], preferred_element_type=f32)
         + b1_ref[...])
    h = jnp.maximum(h, 0.0)

    h = jnp.dot(h.astype(bf16), w2_ref[...], preferred_element_type=f32) + b2_ref[...]
    h = jnp.maximum(h, 0.0)

    h = jnp.dot(h.astype(bf16), w3_ref[...], preferred_element_type=f32) + b3_ref[...]
    h = jnp.maximum(h, 0.0)                       # [TB, 128]; lanes 64..127 == 0

    # fc4: single output column -> VPU mul + XLU lane reduce (no padded matmul).
    out = jnp.sum(h * w4_ref[...], axis=-1, keepdims=True) + b4_ref[...]   # [TB, 1]
    o_ref[...] = out.astype(o_ref.dtype)


def prepare_params(params):
    """One-time (outside the per-call hot path) conversion of raw f32 params
    into the kernel-ready layout."""
    f32 = jnp.float32
    bf16 = jnp.bfloat16
    return {
        "user_embedding": params["user_embedding"].astype(bf16),
        "joke_embedding": params["joke_embedding"].astype(bf16),
        "w1u": params["w1"][:EMBED_DIM].astype(bf16),                       # [256, 256]
        "w1j": params["w1"][EMBED_DIM:].astype(bf16),                       # [256, 256]
        "b1": params["b1"].astype(f32),                                     # [1, 256]
        "w2": params["w2"].astype(bf16),                                    # [256, 128]
        "b2": params["b2"].astype(f32),                                     # [1, 128]
        "w3": jnp.pad(params["w3"], ((0, 0), (0, HP - H3))).astype(bf16),   # [128, 128]
        "b3": jnp.pad(params["b3"], ((0, 0), (0, HP - H3))).astype(f32),    # [1, 128]
        # fc4 weight as an f32 lane row [1, 128] (entries 64..127 zero).
        "w4": jnp.pad(params["w4"], ((0, HP - H3), (0, 0))).T.astype(f32),  # [1, 128]
        "b4": params["b4"].astype(f32),                                     # [1, 1]
    }


def ncf_forward(user_ids, joke_ids, prepared, *, block_b=1024):
    """Full NeuralCollaborative forward.

    user_ids, joke_ids: int32 [B]
    prepared: output of prepare_params()
    returns: float32 [B, 1]
    """
    # Embedding lookups (glue); tables are already bf16 -> gather is bf16.
    ue = jnp.take(prepared["user_embedding"], user_ids, axis=0)   # [B, 256] bf16
    je = jnp.take(prepared["joke_embedding"], joke_ids, axis=0)   # [B, 256] bf16

    batch = ue.shape[0]
    tb = _choose_tile(batch, block_b)
    n_tiles = pl.cdiv(batch, tb)          # ragged last tile handled by Pallas

    batch_spec = lambda cols: pl.BlockSpec((tb, cols), lambda i: (i, 0))
    resident = lambda r, c: pl.BlockSpec((r, c), lambda i: (0, 0))

    out = pl.pallas_call(
        _ncf_mlp_kernel,
        out_shape=jax.ShapeDtypeStruct((batch, H4), jnp.float32),
        grid=(n_tiles,),
        in_specs=[
            batch_spec(EMBED_DIM), batch_spec(EMBED_DIM),                       # ue, je
            resident(EMBED_DIM, H1), resident(EMBED_DIM, H1), resident(1, H1),  # fc1
            resident(H1, H2), resident(1, H2),                                  # fc2
            resident(H2, HP), resident(1, HP),                                  # fc3 (padded)
            resident(1, HP), resident(1, H4),                                   # fc4 (row + bias)
        ],
        out_specs=pl.BlockSpec((tb, H4), lambda i: (i, 0)),
        compiler_params=pltpu.CompilerParams(
            dimension_semantics=("parallel",)),
    )(ue, je,
      prepared["w1u"], prepared["w1j"], prepared["b1"],
      prepared["w2"], prepared["b2"],
      prepared["w3"], prepared["b3"],
      prepared["w4"], prepared["b4"])

    return out                                                     # [B, 1]


def init_params(key, num_users, num_jokes, embedding_dim=EMBED_DIM):
    """Deterministic synthetic init (shapes match the PyTorch module)."""
    ks = jax.random.split(key, 10)
    f32 = jnp.float32

    def lin(kw, kb, fan_in, fan_out):
        scale = 1.0 / jnp.sqrt(f32(fan_in))
        w = jax.random.uniform(kw, (fan_in, fan_out), f32, -scale, scale)
        b = jax.random.uniform(kb, (1, fan_out), f32, -scale, scale)
        return w, b

    w1, b1 = lin(ks[2], ks[3], 2 * embedding_dim, H1)
    w2, b2 = lin(ks[4], ks[5], H1, H2)
    w3, b3 = lin(ks[6], ks[7], H2, H3)
    w4, b4 = lin(ks[8], ks[9], H3, H4)

    return {
        "user_embedding": jax.random.normal(ks[0], (num_users, embedding_dim), f32),
        "joke_embedding": jax.random.normal(ks[1], (num_jokes, embedding_dim), f32),
        "w1": w1, "b1": b1,
        "w2": w2, "b2": b2,
        "w3": w3, "b3": b3,
        "w4": w4, "b4": b4,
    }


def _reference(user_ids, joke_ids, p):
    """Pure-JAX f32 reference matching the PyTorch module semantics."""
    ue = jnp.take(p["user_embedding"], user_ids, axis=0)
    je = jnp.take(p["joke_embedding"], joke_ids, axis=0)
    x = jnp.concatenate([ue, je], axis=1)
    x = jax.nn.relu(x @ p["w1"] + p["b1"])
    x = jax.nn.relu(x @ p["w2"] + p["b2"])
    x = jax.nn.relu(x @ p["w3"] + p["b3"])
    return x @ p["w4"] + p["b4"]


if __name__ == "__main__":
    # Small, deterministic example.
    num_users, num_jokes, batch = 64, 32, 8

    key = jax.random.PRNGKey(0)
    k_params, k_u, k_j = jax.random.split(key, 3)

    params = init_params(k_params, num_users, num_jokes)
    prepared = prepare_params(params)          # one-time, outside the hot path

    user_ids = jax.random.randint(k_u, (batch,), 0, num_users, dtype=jnp.int32)
    joke_ids = jax.random.randint(k_j, (batch,), 0, num_jokes, dtype=jnp.int32)

    fwd = jax.jit(ncf_forward)
    out = jax.block_until_ready(fwd(user_ids, joke_ids, prepared))

    ref = _reference(user_ids, joke_ids, params)
    assert out.shape == (batch, 1), out.shape
    # bf16 MXU inputs / bf16 tables (f32 accumulation) vs f32 reference.
    assert jnp.allclose(out, ref, atol=3e-2, rtol=3e-2), "mismatch vs JAX reference"

    print("KERNEL_OK")
</pallas_src>

<mosaic_0001>
module attributes {stable_mosaic.version = 11 : i64} {
  func.func @_ncf_mlp_kernel(%arg0: i32, %arg1: memref<8x256xbf16, #tpu.memory_space<vmem>>, %arg2: memref<8x256xbf16, #tpu.memory_space<vmem>>, %arg3: memref<256x256xbf16, #tpu.memory_space<vmem>>, %arg4: memref<256x256xbf16, #tpu.memory_space<vmem>>, %arg5: memref<1x256xf32, #tpu.memory_space<vmem>>, %arg6: memref<256x128xbf16, #tpu.memory_space<vmem>>, %arg7: memref<1x128xf32, #tpu.memory_space<vmem>>, %arg8: memref<128x128xbf16, #tpu.memory_space<vmem>>, %arg9: memref<1x128xf32, #tpu.memory_space<vmem>>, %arg10: memref<1x128xf32, #tpu.memory_space<vmem>>, %arg11: memref<1x1xf32, #tpu.memory_space<vmem>>, %arg12: memref<8x1xf32, #tpu.memory_space<vmem>>) attributes {dimension_semantics = [#tpu.dimension_semantics<parallel>], iteration_bounds = array<i64: 1>, scalar_prefetch = 0 : i64, scratch_operands = 0 : i64, tpu.core_type = #tpu.core_type<tc>, window_params = [{transform_indices = @transform_0, window_bounds = array<i64: 8, 256>}, {transform_indices = @transform_1, window_bounds = array<i64: 8, 256>}, {pipeline_mode = #tpu.pipeline_mode<synchronous>, transform_indices = @transform_2, window_bounds = array<i64: 256, 256>}, {pipeline_mode = #tpu.pipeline_mode<synchronous>, transform_indices = @transform_3, window_bounds = array<i64: 256, 256>}, {pipeline_mode = #tpu.pipeline_mode<synchronous>, transform_indices = @transform_4, window_bounds = array<i64: 1, 256>}, {pipeline_mode = #tpu.pipeline_mode<synchronous>, transform_indices = @transform_5, window_bounds = array<i64: 256, 128>}, {pipeline_mode = #tpu.pipeline_mode<synchronous>, transform_indices = @transform_6, window_bounds = array<i64: 1, 128>}, {pipeline_mode = #tpu.pipeline_mode<synchronous>, transform_indices = @transform_7, window_bounds = array<i64: 128, 128>}, {pipeline_mode = #tpu.pipeline_mode<synchronous>, transform_indices = @transform_8, window_bounds = array<i64: 1, 128>}, {pipeline_mode = #tpu.pipeline_mode<synchronous>, transform_indices = @transform_9, window_bounds = array<i64: 1, 128>}, {pipeline_mode = #tpu.pipeline_mode<synchronous>, transform_indices = @transform_10, window_bounds = array<i64: 1, 1>}, {transform_indices = @transform_11, window_bounds = array<i64: 8, 1>}]} {
    %c0 = arith.constant 0 : index
    %c0_0 = arith.constant 0 : index
    %0 = vector.load %arg1[%c0, %c0_0] : memref<8x256xbf16, #tpu.memory_space<vmem>>, vector<8x256xbf16>
    %c0_1 = arith.constant 0 : index
    %c0_2 = arith.constant 0 : index
    %1 = vector.load %arg3[%c0_1, %c0_2] : memref<256x256xbf16, #tpu.memory_space<vmem>>, vector<256x256xbf16>
    %cst = arith.constant dense<0.000000e+00> : vector<8x256xf32>
    %2 = tpu.matmul %0, %1, %cst {dimension_numbers = #tpu.dot_dimension_numbers<[1], [0], [0], [1], [0, 0, 1, 1], [], []>} : vector<8x256xbf16>, vector<256x256xbf16>, vector<8x256xf32> -> vector<8x256xf32>
    %c0_3 = arith.constant 0 : index
    %c0_4 = arith.constant 0 : index
    %3 = vector.load %arg2[%c0_3, %c0_4] : memref<8x256xbf16, #tpu.memory_space<vmem>>, vector<8x256xbf16>
    %c0_5 = arith.constant 0 : index
    %c0_6 = arith.constant 0 : index
    %4 = vector.load %arg4[%c0_5, %c0_6] : memref<256x256xbf16, #tpu.memory_space<vmem>>, vector<256x256xbf16>
    %cst_7 = arith.constant dense<0.000000e+00> : vector<8x256xf32>
    %5 = tpu.matmul %3, %4, %cst_7 {dimension_numbers = #tpu.dot_dimension_numbers<[1], [0], [0], [1], [0, 0, 1, 1], [], []>} : vector<8x256xbf16>, vector<256x256xbf16>, vector<8x256xf32> -> vector<8x256xf32>
    %6 = arith.addf %2, %5 : vector<8x256xf32>
    %c0_8 = arith.constant 0 : index
    %c0_9 = arith.constant 0 : index
    %7 = vector.load %arg5[%c0_8, %c0_9] : memref<1x256xf32, #tpu.memory_space<vmem>>, vector<1x256xf32>
    %8 = vector.broadcast %7 : vector<1x256xf32> to vector<8x256xf32>
    %9 = arith.addf %6, %8 : vector<8x256xf32>
    %cst_10 = arith.constant 0.000000e+00 : f32
    %10 = vector.broadcast %cst_10 : f32 to vector<8x256xf32>
    %11 = arith.maximumf %9, %10 : vector<8x256xf32>
    %12 = arith.truncf %11 : vector<8x256xf32> to vector<8x256xbf16>
    %c0_11 = arith.constant 0 : index
    %c0_12 = arith.constant 0 : index
    %13 = vector.load %arg6[%c0_11, %c0_12] : memref<256x128xbf16, #tpu.memory_space<vmem>>, vector<256x128xbf16>
    %cst_13 = arith.constant dense<0.000000e+00> : vector<8x128xf32>
    %14 = tpu.matmul %12, %13, %cst_13 {dimension_numbers = #tpu.dot_dimension_numbers<[1], [0], [0], [1], [0, 0, 1, 1], [], []>} : vector<8x256xbf16>, vector<256x128xbf16>, vector<8x128xf32> -> vector<8x128xf32>
    %c0_14 = arith.constant 0 : index
    %c0_15 = arith.constant 0 : index
    %15 = vector.load %arg7[%c0_14, %c0_15] : memref<1x128xf32, #tpu.memory_space<vmem>>, vector<1x128xf32>
    %16 = vector.broadcast %15 : vector<1x128xf32> to vector<8x128xf32>
    %17 = arith.addf %14, %16 : vector<8x128xf32>
    %cst_16 = arith.constant 0.000000e+00 : f32
    %18 = vector.broadcast %cst_16 : f32 to vector<8x128xf32>
    %19 = arith.maximumf %17, %18 : vector<8x128xf32>
    %20 = arith.truncf %19 : vector<8x128xf32> to vector<8x128xbf16>
    %c0_17 = arith.constant 0 : index
    %c0_18 = arith.constant 0 : index
    %21 = vector.load %arg8[%c0_17, %c0_18] : memref<128x128xbf16, #tpu.memory_space<vmem>>, vector<128x128xbf16>
    %cst_19 = arith.constant dense<0.000000e+00> : vector<8x128xf32>
    %22 = tpu.matmul %20, %21, %cst_19 {dimension_numbers = #tpu.dot_dimension_numbers<[1], [0], [0], [1], [0, 0, 1, 1], [], []>} : vector<8x128xbf16>, vector<128x128xbf16>, vector<8x128xf32> -> vector<8x128xf32>
    %c0_20 = arith.constant 0 : index
    %c0_21 = arith.constant 0 : index
    %23 = vector.load %arg9[%c0_20, %c0_21] : memref<1x128xf32, #tpu.memory_space<vmem>>, vector<1x128xf32>
    %24 = vector.broadcast %23 : vector<1x128xf32> to vector<8x128xf32>
    %25 = arith.addf %22, %24 : vector<8x128xf32>
    %cst_22 = arith.constant 0.000000e+00 : f32
    %26 = vector.broadcast %cst_22 : f32 to vector<8x128xf32>
    %27 = arith.maximumf %25, %26 : vector<8x128xf32>
    %c0_23 = arith.constant 0 : index
    %c0_24 = arith.constant 0 : index
    %28 = vector.load %arg10[%c0_23, %c0_24] : memref<1x128xf32, #tpu.memory_space<vmem>>, vector<1x128xf32>
    %29 = vector.broadcast %28 : vector<1x128xf32> to vector<8x128xf32>
    %30 = arith.mulf %27, %29 : vector<8x128xf32>
    %cst_25 = arith.constant dense<0.000000e+00> : vector<8xf32>
    %31 = vector.multi_reduction <add>, %30, %cst_25 [1] : vector<8x128xf32> to vector<8xf32>
    %32 = vector.shape_cast %31 : vector<8xf32> to vector<8x1xf32>
    %c0_26 = arith.constant 0 : index
    %c0_27 = arith.constant 0 : index
    %33 = vector.load %arg11[%c0_26, %c0_27] : memref<1x1xf32, #tpu.memory_space<vmem>>, vector<1x1xf32>
    %34 = vector.broadcast %33 : vector<1x1xf32> to vector<8x1xf32>
    %35 = arith.addf %32, %34 : vector<8x1xf32>
    %c0_28 = arith.constant 0 : index
    %c0_29 = arith.constant 0 : index
    %36 = vector.load %arg12[%c0_28, %c0_29] : memref<8x1xf32, #tpu.memory_space<vmem>>, vector<8x1xf32>
    tpu.vector_store %arg12[%c0_28, %c0_29], %35 {strides = array<i32>} : memref<8x1xf32, #tpu.memory_space<vmem>>, vector<8x1xf32>,
    return
  }
  func.func @transform_0(%arg0: i32) -> (i32, i32) {
    %c0_i32 = arith.constant 0 : i32
    %c0_i32_0 = arith.constant 0 : i32
    return %arg0, %c0_i32 : i32, i32
  }
  func.func @transform_1(%arg0: i32) -> (i32, i32) {
    %c0_i32 = arith.constant 0 : i32
    %c0_i32_0 = arith.constant 0 : i32
    return %arg0, %c0_i32 : i32, i32
  }
  func.func @transform_2(%arg0: i32) -> (i32, i32) {
    %c0_i32 = arith.constant 0 : i32
    %c0_i32_0 = arith.constant 0 : i32
    %c0_i32_1 = arith.constant 0 : i32
    return %c0_i32, %c0_i32_0 : i32, i32
  }
  func.func @transform_3(%arg0: i32) -> (i32, i32) {
    %c0_i32 = arith.constant 0 : i32
    %c0_i32_0 = arith.constant 0 : i32
    %c0_i32_1 = arith.constant 0 : i32
    return %c0_i32, %c0_i32_0 : i32, i32
  }
  func.func @transform_4(%arg0: i32) -> (i32, i32) {
    %c0_i32 = arith.constant 0 : i32
    %c0_i32_0 = arith.constant 0 : i32
    %c0_i32_1 = arith.constant 0 : i32
    return %c0_i32, %c0_i32_0 : i32, i32
  }
  func.func @transform_5(%arg0: i32) -> (i32, i32) {
    %c0_i32 = arith.constant 0 : i32
    %c0_i32_0 = arith.constant 0 : i32
    %c0_i32_1 = arith.constant 0 : i32
    return %c0_i32, %c0_i32_0 : i32, i32
  }
  func.func @transform_6(%arg0: i32) -> (i32, i32) {
    %c0_i32 = arith.constant 0 : i32
    %c0_i32_0 = arith.constant 0 : i32
    %c0_i32_1 = arith.constant 0 : i32
    return %c0_i32, %c0_i32_0 : i32, i32
  }
  func.func @transform_7(%arg0: i32) -> (i32, i32) {
    %c0_i32 = arith.constant 0 : i32
    %c0_i32_0 = arith.constant 0 : i32
    %c0_i32_1 = arith.constant 0 : i32
    return %c0_i32, %c0_i32_0 : i32, i32
  }
  func.func @transform_8(%arg0: i32) -> (i32, i32) {
    %c0_i32 = arith.constant 0 : i32
    %c0_i32_0 = arith.constant 0 : i32
    %c0_i32_1 = arith.constant 0 : i32
    return %c0_i32, %c0_i32_0 : i32, i32
  }
  func.func @transform_9(%arg0: i32) -> (i32, i32) {
    %c0_i32 = arith.constant 0 : i32
    %c0_i32_0 = arith.constant 0 : i32
    %c0_i32_1 = arith.constant 0 : i32
    return %c0_i32, %c0_i32_0 : i32, i32
  }
  func.func @transform_10(%arg0: i32) -> (i32, i32) {
    %c0_i32 = arith.constant 0 : i32
    %c0_i32_0 = arith.constant 0 : i32
    %c0_i32_1 = arith.constant 0 : i32
    return %c0_i32, %c0_i32_0 : i32, i32
  }
  func.func @transform_11(%arg0: i32) -> (i32, i32) {
    %c0_i32 = arith.constant 0 : i32
    %c0_i32_0 = arith.constant 0 : i32
    return %arg0, %c0_i32 : i32, i32
  }
}

</mosaic_0001>

<llo_original>
// kernel: ncf_forward.1
$region0: #{ncf_forward.1}
  #allocation0 [shape = 'u32[]', space=smem, size = 0x4, offset = 0x4, fixed_abs, tag = 'smem constant byte address 0x4 - core index']
  #allocation1 [shape = 'u32[144,128]{1,0:T(1,128)}', space=vmem, size = 0x12000, scoped, tag = 'internal scratch']
  #allocation2 [shape = 'f32[1,1]{1,0:T(1,128)S(1)}', space=vmem, size = 0x200, scoped, tag = 'scoped memory for ncf_forward.1']
  %s0 = inlined_call_operand.vmem [shape: bf16[8,256], index: 0, kind: input, shape index: {}]
  %s1 = inlined_call_operand.vmem [shape: bf16[8,256], index: 1, kind: input, shape index: {}]
  %s2 = inlined_call_operand.hbm [shape: bf16[256,256], index: 2, kind: input, shape index: {}]
  %s3 = inlined_call_operand.hbm [shape: bf16[256,256], index: 3, kind: input, shape index: {}]
  %s4 = inlined_call_operand.vmem [shape: f32[1,256], index: 4, kind: input, shape index: {}]
  %s5 = inlined_call_operand.vmem [shape: bf16[256,128], index: 5, kind: input, shape index: {}]
  %s6 = inlined_call_operand.vmem [shape: f32[1,128], index: 6, kind: input, shape index: {}]
  %s7 = inlined_call_operand.vmem [shape: bf16[128,128], index: 7, kind: input, shape index: {}]
  %s8 = inlined_call_operand.vmem [shape: f32[1,128], index: 8, kind: input, shape index: {}]
  %s9 = inlined_call_operand.hbm [shape: f32[1,128], index: 9, kind: input, shape index: {}]
  %s10 = inlined_call_operand.<no memory space> [shape: f32[1,1], index: 10, kind: input, shape index: {}]
  %s11 = inlined_call_operand.vmem [shape: f32[8,1], index: 11, kind: output, shape index: {}]
  %s12 = sld [smem:[#allocation0]]
  $region66: #{ncf_forward.1} parent=0
    _
  %s14 = ssub.s32 1, %s12
  %s15 = scalar_select 0, %s14, %s12
  %v16 = vstv %s10
  %17 = vst [vmem:[#allocation2] sm:$0x1] %v16
  $region1: #{ncf_forward.1} parent=0
    #allocation3 [shape = 'u8[131072]{0}', space=vmem, size = 0x20000, scoped, tag = 'input window, operand 2, single buffered']
    #allocation4 [shape = 's32[1]{0}', space=sflag, size = 0x4, scoped, tag = 'scoped memory for ncf_forward.1']
    #allocation5 [shape = 'u8[131072]{0}', space=vmem, size = 0x20000, scoped, tag = 'input window, operand 3, single buffered']
    #allocation6 [shape = 's32[1]{0}', space=sflag, size = 0x4, scoped, tag = 'scoped memory for ncf_forward.1']
    #allocation7 [shape = 'u8[512]{0}', space=vmem, size = 0x400, scoped, tag = 'input window, operand 9, single buffered']
    %18 = vsyncpa [#allocation4], 0
    %19 = vsyncpa [#allocation6], 0
    // Predicated region
    $region2: #{ncf_forward.1} parent=1 // pred_check
      _
    $region3: #{ncf_forward.1} parent=1 // pred_check_branch
      %21 = sbr.rel (0) target = $region5
    $region4: #{ncf_forward.1} parent=1 // pred_region
      _
    $region5: #{ncf_forward.1} parent=1 // pred_fallthru
      _
    // Predicated region
    $region6: #{ncf_forward.1} parent=1 // pred_check
      _
    $region7: #{ncf_forward.1} parent=1 // pred_check_branch
      %23 = sbr.rel (0) target = $region9
    $region8: #{ncf_forward.1} parent=1 // pred_region
      _
    $region9: #{ncf_forward.1} parent=1 // pred_fallthru
      _
    // Predicated region
    $region10: #{ncf_forward.1} parent=1 // pred_check
      _
    $region11: #{ncf_forward.1} parent=1 // pred_check_branch
      %25 = sbr.rel (0) target = $region13
    $region12: #{ncf_forward.1} parent=1 // pred_region
      %s27 = ssub.s32 4096, 4096
      %28 = vsyncadd [#allocation4], %s27
      %s29 = sshll.u32 [#allocation3], 4
      %s30 = int_to_ptr.vmem [resolvable:$true] %s29
      %35 = dma.hbm_to_vmem [thread:$0]  %s2, 4096, %s30, [#allocation4], 128, 128, 8
    $region13: #{ncf_forward.1} parent=1 // pred_fallthru
      _
    // Predicated region
    $region14: #{ncf_forward.1} parent=1 // pred_check
      _
    $region15: #{ncf_forward.1} parent=1 // pred_check_branch
      %37 = sbr.rel (0) target = $region17
    $region16: #{ncf_forward.1} parent=1 // pred_region
      %s39 = ssub.s32 4096, 4096
      %40 = vsyncadd [#allocation6], %s39
      %s41 = sshll.u32 [#allocation5], 4
      %s42 = int_to_ptr.vmem [resolvable:$true] %s41
      %47 = dma.hbm_to_vmem [thread:$0]  %s3, 4096, %s42, [#allocation6], 128, 128, 8
    $region17: #{ncf_forward.1} parent=1 // pred_fallthru
      _
    // Predicated region
    $region18: #{ncf_forward.1} parent=1 // pred_check
      _
    $region19: #{ncf_forward.1} parent=1 // pred_check_branch
      %49 = sbr.rel (0) target = $region21
    $region20: #{ncf_forward.1} parent=1 // pred_region
      _
    $region21: #{ncf_forward.1} parent=1 // pred_fallthru
      _
    // Predicated region
    $region22: #{ncf_forward.1} parent=1 // pred_check
      _
    $region23: #{ncf_forward.1} parent=1 // pred_check_branch
      %51 = sbr.rel (0) target = $region25
    $region24: #{ncf_forward.1} parent=1 // pred_region
      _
    $region25: #{ncf_forward.1} parent=1 // pred_fallthru
      _
    // Predicated region
    $region26: #{ncf_forward.1} parent=1 // pred_check
      _
    $region27: #{ncf_forward.1} parent=1 // pred_check_branch
      %53 = sbr.rel (0) target = $region29
    $region28: #{ncf_forward.1} parent=1 // pred_region
      _
    $region29: #{ncf_forward.1} parent=1 // pred_fallthru
      _
    // Predicated region
    $region30: #{ncf_forward.1} parent=1 // pred_check
      _
    $region31: #{ncf_forward.1} parent=1 // pred_check_branch
      %55 = sbr.rel (0) target = $region33
    $region32: #{ncf_forward.1} parent=1 // pred_region
      _
    $region33: #{ncf_forward.1} parent=1 // pred_fallthru
      _
    // Predicated region
    $region34: #{ncf_forward.1} parent=1 // pred_check
      _
    $region35: #{ncf_forward.1} parent=1 // pred_check_branch
      %57 = sbr.rel (0) target = $region37
    $region36: #{ncf_forward.1} parent=1 // pred_region
      _
    $region37: #{ncf_forward.1} parent=1 // pred_fallthru
      _
    // Predicated region
    $region38: #{ncf_forward.1} parent=1 // pred_check
      _
    $region39: #{ncf_forward.1} parent=1 // pred_check_branch
      %59 = sbr.rel (0) target = $region41
    $region40: #{ncf_forward.1} parent=1 // pred_region
      %s61 = ssub.s32 16, 16
      %62 = vsyncadd [#allocation6], %s61
      %s64 = sshll.u32 [#allocation7], 4
      %s65 = int_to_ptr.vmem [resolvable:$true] %s64
      %67 = dma.hbm_to_vmem [thread:$0]  %s9, 16, %s65, [#allocation6]
    $region41: #{ncf_forward.1} parent=1 // pred_fallthru
      _
    // Predicated region
    $region42: #{ncf_forward.1} parent=1 // pred_check
      _
    $region43: #{ncf_forward.1} parent=1 // pred_check_branch
      %69 = sbr.rel (0) target = $region45
    $region44: #{ncf_forward.1} parent=1 // pred_region
      _
    $region45: #{ncf_forward.1} parent=1 // pred_fallthru
      _
    // Predicated region
    $region46: #{ncf_forward.1} parent=1 // pred_check
      _
    $region47: #{ncf_forward.1} parent=1 // pred_check_branch
      %71 = sbr.rel (0) target = $region49
    $region48: #{ncf_forward.1} parent=1 // pred_region
      %72 = dma.done [#allocation4], 4096
    $region49: #{ncf_forward.1} parent=1 // pred_fallthru
      _
    // Predicated region
    $region50: #{ncf_forward.1} parent=1 // pred_check
      _
    $region51: #{ncf_forward.1} parent=1 // pred_check_branch
      %74 = sbr.rel (0) target = $region53
    $region52: #{ncf_forward.1} parent=1 // pred_region
      %75 = dma.done [#allocation6], 4096
    $region53: #{ncf_forward.1} parent=1 // pred_fallthru
      _
    // Predicated region
    $region54: #{ncf_forward.1} parent=1 // pred_check
      _
    $region55: #{ncf_forward.1} parent=1 // pred_check_branch
      %77 = sbr.rel (0) target = $region57
    $region56: #{ncf_forward.1} parent=1 // pred_region
      %78 = dma.done [#allocation6], 16
    $region57: #{ncf_forward.1} parent=1 // pred_fallthru
      _
    %v80 = vld [vmem:[%s0] sm:$0xff]
    %v81 = vld [vmem:[#allocation3] sm:$0xff]
    %v82 = vld [vmem:[#allocation3 + $0x8] sm:$0xff]
    %v83 = vld [vmem:[#allocation3 + $0x10] sm:$0xff]
    %v84 = vld [vmem:[#allocation3 + $0x18] sm:$0xff]
    %v85 = vld [vmem:[#allocation3 + $0x20] sm:$0xff]
    %v86 = vld [vmem:[#allocation3 + $0x28] sm:$0xff]
    %v87 = vld [vmem:[#allocation3 + $0x30] sm:$0xff]
    %v88 = vld [vmem:[#allocation3 + $0x38] sm:$0xff]
    %v89 = vld [vmem:[#allocation3 + $0x40] sm:$0xff]
    %v90 = vld [vmem:[#allocation3 + $0x48] sm:$0xff]
    %v91 = vld [vmem:[#allocation3 + $0x50] sm:$0xff]
    %v92 = vld [vmem:[#allocation3 + $0x58] sm:$0xff]
    %v93 = vld [vmem:[#allocation3 + $0x60] sm:$0xff]
    %v94 = vld [vmem:[#allocation3 + $0x68] sm:$0xff]
    %v95 = vld [vmem:[#allocation3 + $0x70] sm:$0xff]
    %v96 = vld [vmem:[#allocation3 + $0x78] sm:$0xff]
    %v97 = vld [vmem:[#allocation3 + $0x80] sm:$0xff]
    %v98 = vld [vmem:[#allocation3 + $0x88] sm:$0xff]
    %v99 = vld [vmem:[#allocation3 + $0x90] sm:$0xff]
    %v100 = vld [vmem:[#allocation3 + $0x98] sm:$0xff]
    %v101 = vld [vmem:[#allocation3 + $0xa0] sm:$0xff]
    %v102 = vld [vmem:[#allocation3 + $0xa8] sm:$0xff]
    %v103 = vld [vmem:[#allocation3 + $0xb0] sm:$0xff]
    %v104 = vld [vmem:[#allocation3 + $0xb8] sm:$0xff]
    %v105 = vld [vmem:[#allocation3 + $0xc0] sm:$0xff]
    %v106 = vld [vmem:[#allocation3 + $0xc8] sm:$0xff]
    %v107 = vld [vmem:[#allocation3 + $0xd0] sm:$0xff]
    %v108 = vld [vmem:[#allocation3 + $0xd8] sm:$0xff]
    %v109 = vld [vmem:[#allocation3 + $0xe0] sm:$0xff]
    %v110 = vld [vmem:[#allocation3 + $0xe8] sm:$0xff]
    %v111 = vld [vmem:[#allocation3 + $0xf0] sm:$0xff]
    %v112 = vld [vmem:[#allocation3 + $0xf8] sm:$0xff]
    %v113 = vld [vmem:[%s1] sm:$0xff]
    %v114 = vld [vmem:[#allocation5] sm:$0xff]
    %v115 = vld [vmem:[#allocation5 + $0x8] sm:$0xff]
    %v116 = vld [vmem:[#allocation5 + $0x10] sm:$0xff]
    %v117 = vld [vmem:[#allocation5 + $0x18] sm:$0xff]
    %v118 = vld [vmem:[#allocation5 + $0x20] sm:$0xff]
    %v119 = vld [vmem:[#allocation5 + $0x28] sm:$0xff]
    %v120 = vld [vmem:[#allocation5 + $0x30] sm:$0xff]
    %v121 = vld [vmem:[#allocation5 + $0x38] sm:$0xff]
    %v122 = vld [vmem:[#allocation5 + $0x40] sm:$0xff]
    %v123 = vld [vmem:[#allocation5 + $0x48] sm:$0xff]
    %v124 = vld [vmem:[#allocation5 + $0x50] sm:$0xff]
    %v125 = vld [vmem:[#allocation5 + $0x58] sm:$0xff]
    %v126 = vld [vmem:[#allocation5 + $0x60] sm:$0xff]
    %v127 = vld [vmem:[#allocation5 + $0x68] sm:$0xff]
    %v128 = vld [vmem:[#allocation5 + $0x70] sm:$0xff]
    %v129 = vld [vmem:[#allocation5 + $0x78] sm:$0xff]
    %v130 = vld [vmem:[#allocation5 + $0x80] sm:$0xff]
    %v131 = vld [vmem:[#allocation5 + $0x88] sm:$0xff]
    %v132 = vld [vmem:[#allocation5 + $0x90] sm:$0xff]
    %v133 = vld [vmem:[#allocation5 + $0x98] sm:$0xff]
    %v134 = vld [vmem:[#allocation5 + $0xa0] sm:$0xff]
    %v135 = vld [vmem:[#allocation5 + $0xa8] sm:$0xff]
    %v136 = vld [vmem:[#allocation5 + $0xb0] sm:$0xff]
    %v137 = vld [vmem:[#allocation5 + $0xb8] sm:$0xff]
    %v138 = vld [vmem:[#allocation5 + $0xc0] sm:$0xff]
    %v139 = vld [vmem:[#allocation5 + $0xc8] sm:$0xff]
    %v140 = vld [vmem:[#allocation5 + $0xd0] sm:$0xff]
    %v141 = vld [vmem:[#allocation5 + $0xd8] sm:$0xff]
    %v142 = vld [vmem:[#allocation5 + $0xe0] sm:$0xff]
    %v143 = vld [vmem:[#allocation5 + $0xe8] sm:$0xff]
    %v144 = vld [vmem:[#allocation5 + $0xf0] sm:$0xff]
    %v145 = vld [vmem:[#allocation5 + $0xf8] sm:$0xff]
    %v147 = vunpack.c.l.b16 %v113
    %v148 = vunpack.c.h.b16 %v113
    %v149 = vpack.c.b16 %v147, %v147
    %v150 = vpack.c.b16 %v148, %v148
    %v185 = vunpack.c.l.b16 %v114
    %v186 = vunpack.c.h.b16 %v114
    %v187 = vunpack.c.l.b16 %v115
    %v188 = vunpack.c.h.b16 %v115
    %v189 = vunpack.c.l.b16 %v116
    %v190 = vunpack.c.h.b16 %v116
    %v191 = vunpack.c.l.b16 %v117
    %v192 = vunpack.c.h.b16 %v117
    %v193 = vunpack.c.l.b16 %v118
    %v194 = vunpack.c.h.b16 %v118
    %v195 = vunpack.c.l.b16 %v119
    %v196 = vunpack.c.h.b16 %v119
    %v197 = vunpack.c.l.b16 %v120
    %v198 = vunpack.c.h.b16 %v120
    %v199 = vunpack.c.l.b16 %v121
    %v200 = vunpack.c.h.b16 %v121
    %v201 = vunpack.c.l.b16 %v122
    %v202 = vunpack.c.h.b16 %v122
    %v203 = vunpack.c.l.b16 %v123
    %v204 = vunpack.c.h.b16 %v123
    %v205 = vunpack.c.l.b16 %v124
    %v206 = vunpack.c.h.b16 %v124
    %v207 = vunpack.c.l.b16 %v125
    %v208 = vunpack.c.h.b16 %v125
    %v209 = vunpack.c.l.b16 %v126
    %v210 = vunpack.c.h.b16 %v126
    %v211 = vunpack.c.l.b16 %v127
    %v212 = vunpack.c.h.b16 %v127
    %v213 = vunpack.c.l.b16 %v128
    %v214 = vunpack.c.h.b16 %v128
    %v215 = vunpack.c.l.b16 %v129
    %v216 = vunpack.c.h.b16 %v129
    %v217 = vunpack.c.l.b16 %v130
    %v218 = vunpack.c.h.b16 %v130
    %v219 = vunpack.c.l.b16 %v131
    %v220 = vunpack.c.h.b16 %v131
    %v221 = vunpack.c.l.b16 %v132
    %v222 = vunpack.c.h.b16 %v132
    %v223 = vunpack.c.l.b16 %v133
    %v224 = vunpack.c.h.b16 %v133
    %v225 = vunpack.c.l.b16 %v134
    %v226 = vunpack.c.h.b16 %v134
    %v227 = vunpack.c.l.b16 %v135
    %v228 = vunpack.c.h.b16 %v135
    %v229 = vunpack.c.l.b16 %v136
    %v230 = vunpack.c.h.b16 %v136
    %v231 = vunpack.c.l.b16 %v137
    %v232 = vunpack.c.h.b16 %v137
    %v233 = vunpack.c.l.b16 %v138
    %v234 = vunpack.c.h.b16 %v138
    %v235 = vunpack.c.l.b16 %v139
    %v236 = vunpack.c.h.b16 %v139
    %v237 = vunpack.c.l.b16 %v140
    %v238 = vunpack.c.h.b16 %v140
    %v239 = vunpack.c.l.b16 %v141
    %v240 = vunpack.c.h.b16 %v141
    %v241 = vunpack.c.l.b16 %v142
    %v242 = vunpack.c.h.b16 %v142
    %v243 = vunpack.c.l.b16 %v143
    %v244 = vunpack.c.h.b16 %v143
    %v245 = vunpack.c.l.b16 %v144
    %v246 = vunpack.c.h.b16 %v144
    %v247 = vunpack.c.l.b16 %v145
    %v248 = vunpack.c.h.b16 %v145
    %v249 = vpack.c.b16 %v187, %v185
    %v250 = vpack.c.b16 %v188, %v186
    %v251 = vpack.c.b16 %v191, %v189
    %v252 = vpack.c.b16 %v192, %v190
    %v253 = vpack.c.b16 %v195, %v193
    %v254 = vpack.c.b16 %v196, %v194
    %v255 = vpack.c.b16 %v199, %v197
    %v256 = vpack.c.b16 %v200, %v198
    %v257 = vpack.c.b16 %v203, %v201
    %v258 = vpack.c.b16 %v204, %v202
    %v259 = vpack.c.b16 %v207, %v205
    %v260 = vpack.c.b16 %v208, %v206
    %v261 = vpack.c.b16 %v211, %v209
    %v262 = vpack.c.b16 %v212, %v210
    %v263 = vpack.c.b16 %v215, %v213
    %v264 = vpack.c.b16 %v216, %v214
    %v265 = vpack.c.b16 %v219, %v217
    %v266 = vpack.c.b16 %v220, %v218
    %v267 = vpack.c.b16 %v223, %v221
    %v268 = vpack.c.b16 %v224, %v222
    %v269 = vpack.c.b16 %v227, %v225
    %v270 = vpack.c.b16 %v228, %v226
    %v271 = vpack.c.b16 %v231, %v229
    %v272 = vpack.c.b16 %v232, %v230
    %v273 = vpack.c.b16 %v235, %v233
    %v274 = vpack.c.b16 %v236, %v234
    %v275 = vpack.c.b16 %v239, %v237
    %v276 = vpack.c.b16 %v240, %v238
    %v277 = vpack.c.b16 %v243, %v241
    %v278 = vpack.c.b16 %v244, %v242
    %v279 = vpack.c.b16 %v247, %v245
    %v280 = vpack.c.b16 %v248, %v246
    %313 = vmatprep.subr.bf16.mxu0 %v250
    %314 = vmatpush1.bf16.msra.mxu0 %v249
    %315 = vmatprep.subr.bf16.mxu0 %v252
    %316 = vmatpush1.bf16.msra.mxu0 %v251
    %317 = vmatprep.subr.bf16.mxu0 %v254
    %318 = vmatpush1.bf16.msra.mxu0 %v253
    %319 = vmatprep.subr.bf16.mxu0 %v256
    %320 = vmatpush1.bf16.msra.mxu0 %v255
    %321 = vmatprep.subr.bf16.mxu0 %v258
    %322 = vmatpush1.bf16.msra.mxu0 %v257
    %323 = vmatprep.subr.bf16.mxu0 %v260
    %324 = vmatpush1.bf16.msra.mxu0 %v259
    %325 = vmatprep.subr.bf16.mxu0 %v262
    %326 = vmatpush1.bf16.msra.mxu0 %v261
    %327 = vmatprep.subr.bf16.mxu0 %v264
    %328 = vmatpush1.bf16.msra.mxu0 %v263
    %329 = vmatprep.subr.bf16.mxu0 %v266
    %330 = vmatpush1.bf16.msra.mxu0 %v265
    %331 = vmatprep.subr.bf16.mxu0 %v268
    %332 = vmatpush1.bf16.msra.mxu0 %v267
    %333 = vmatprep.subr.bf16.mxu0 %v270
    %334 = vmatpush1.bf16.msra.mxu0 %v269
    %335 = vmatprep.subr.bf16.mxu0 %v272
    %336 = vmatpush1.bf16.msra.mxu0 %v271
    %337 = vmatprep.subr.bf16.mxu0 %v274
    %338 = vmatpush1.bf16.msra.mxu0 %v273
    %339 = vmatprep.subr.bf16.mxu0 %v276
    %340 = vmatpush1.bf16.msra.mxu0 %v275
    %341 = vmatprep.subr.bf16.mxu0 %v278
    %342 = vmatpush1.bf16.msra.mxu0 %v277
    %343 = vmatprep.subr.bf16.mxu0 %v280
    %344 = vmatpush1.bf16.msra.mxu0 %v279
    %345 = vmatprep.mubr.bf16.mxu0 %v150
    %346 = vmatmul.mubr.bf16.gmra.mrb[0].mxu0 %v149
    %v347 = vpop.f32.mrb[0].mxu0
    %v348 = vadd.f32 0.0, %v347
    %v349 = vpop.f32.mrb[0].mxu0
    %v350 = vadd.f32 0.0, %v349
    %v351 = vpop.f32.mrb[0].mxu0
    %v352 = vpop.f32.mrb[0].mxu0
    %353 = vdwg.mxu0
    %v355 = vunpack.c.l.b16 %v80
    %v356 = vunpack.c.h.b16 %v80
    %v357 = vpack.c.b16 %v355, %v355
    %v358 = vpack.c.b16 %v356, %v356
    %v393 = vunpack.c.l.b16 %v81
    %v394 = vunpack.c.h.b16 %v81
    %v395 = vunpack.c.l.b16 %v82
    %v396 = vunpack.c.h.b16 %v82
    %v397 = vunpack.c.l.b16 %v83
    %v398 = vunpack.c.h.b16 %v83
    %v399 = vunpack.c.l.b16 %v84
    %v400 = vunpack.c.h.b16 %v84
    %v401 = vunpack.c.l.b16 %v85
    %v402 = vunpack.c.h.b16 %v85
    %v403 = vunpack.c.l.b16 %v86
    %v404 = vunpack.c.h.b16 %v86
    %v405 = vunpack.c.l.b16 %v87
    %v406 = vunpack.c.h.b16 %v87
    %v407 = vunpack.c.l.b16 %v88
    %v408 = vunpack.c.h.b16 %v88
    %v409 = vunpack.c.l.b16 %v89
    %v410 = vunpack.c.h.b16 %v89
    %v411 = vunpack.c.l.b16 %v90
    %v412 = vunpack.c.h.b16 %v90
    %v413 = vunpack.c.l.b16 %v91
    %v414 = vunpack.c.h.b16 %v91
    %v415 = vunpack.c.l.b16 %v92
    %v416 = vunpack.c.h.b16 %v92
    %v417 = vunpack.c.l.b16 %v93
    %v418 = vunpack.c.h.b16 %v93
    %v419 = vunpack.c.l.b16 %v94
    %v420 = vunpack.c.h.b16 %v94
    %v421 = vunpack.c.l.b16 %v95
    %v422 = vunpack.c.h.b16 %v95
    %v423 = vunpack.c.l.b16 %v96
    %v424 = vunpack.c.h.b16 %v96
    %v425 = vunpack.c.l.b16 %v97
    %v426 = vunpack.c.h.b16 %v97
    %v427 = vunpack.c.l.b16 %v98
    %v428 = vunpack.c.h.b16 %v98
    %v429 = vunpack.c.l.b16 %v99
    %v430 = vunpack.c.h.b16 %v99
    %v431 = vunpack.c.l.b16 %v100
    %v432 = vunpack.c.h.b16 %v100
    %v433 = vunpack.c.l.b16 %v101
    %v434 = vunpack.c.h.b16 %v101
    %v435 = vunpack.c.l.b16 %v102
    %v436 = vunpack.c.h.b16 %v102
    %v437 = vunpack.c.l.b16 %v103
    %v438 = vunpack.c.h.b16 %v103
    %v439 = vunpack.c.l.b16 %v104
    %v440 = vunpack.c.h.b16 %v104
    %v441 = vunpack.c.l.b16 %v105
    %v442 = vunpack.c.h.b16 %v105
    %v443 = vunpack.c.l.b16 %v106
    %v444 = vunpack.c.h.b16 %v106
    %v445 = vunpack.c.l.b16 %v107
    %v446 = vunpack.c.h.b16 %v107
    %v447 = vunpack.c.l.b16 %v108
    %v448 = vunpack.c.h.b16 %v108
    %v449 = vunpack.c.l.b16 %v109
    %v450 = vunpack.c.h.b16 %v109
    %v451 = vunpack.c.l.b16 %v110
    %v452 = vunpack.c.h.b16 %v110
    %v453 = vunpack.c.l.b16 %v111
    %v454 = vunpack.c.h.b16 %v111
    %v455 = vunpack.c.l.b16 %v112
    %v456 = vunpack.c.h.b16 %v112
    %v457 = vpack.c.b16 %v395, %v393
    %v458 = vpack.c.b16 %v396, %v394
    %v459 = vpack.c.b16 %v399, %v397
    %v460 = vpack.c.b16 %v400, %v398
    %v461 = vpack.c.b16 %v403, %v401
    %v462 = vpack.c.b16 %v404, %v402
    %v463 = vpack.c.b16 %v407, %v405
    %v464 = vpack.c.b16 %v408, %v406
    %v465 = vpack.c.b16 %v411, %v409
    %v466 = vpack.c.b16 %v412, %v410
    %v467 = vpack.c.b16 %v415, %v413
    %v468 = vpack.c.b16 %v416, %v414
    %v469 = vpack.c.b16 %v419, %v417
    %v470 = vpack.c.b16 %v420, %v418
    %v471 = vpack.c.b16 %v423, %v421
    %v472 = vpack.c.b16 %v424, %v422
    %v473 = vpack.c.b16 %v427, %v425
    %v474 = vpack.c.b16 %v428, %v426
    %v475 = vpack.c.b16 %v431, %v429
    %v476 = vpack.c.b16 %v432, %v430
    %v477 = vpack.c.b16 %v435, %v433
    %v478 = vpack.c.b16 %v436, %v434
    %v479 = vpack.c.b16 %v439, %v437
    %v480 = vpack.c.b16 %v440, %v438
    %v481 = vpack.c.b16 %v443, %v441
    %v482 = vpack.c.b16 %v444, %v442
    %v483 = vpack.c.b16 %v447, %v445
    %v484 = vpack.c.b16 %v448, %v446
    %v485 = vpack.c.b16 %v451, %v449
    %v486 = vpack.c.b16 %v452, %v450
    %v487 = vpack.c.b16 %v455, %v453
    %v488 = vpack.c.b16 %v456, %v454
    %521 = vmatprep.subr.bf16.mxu0 %v458
    %522 = vmatpush1.bf16.msra.mxu0 %v457
    %523 = vmatprep.subr.bf16.mxu0 %v460
    %524 = vmatpush1.bf16.msra.mxu0 %v459
    %525 = vmatprep.subr.bf16.mxu0 %v462
    %526 = vmatpush1.bf16.msra.mxu0 %v461
    %527 = vmatprep.subr.bf16.mxu0 %v464
    %528 = vmatpush1.bf16.msra.mxu0 %v463
    %529 = vmatprep.subr.bf16.mxu0 %v466
    %530 = vmatpush1.bf16.msra.mxu0 %v465
    %531 = vmatprep.subr.bf16.mxu0 %v468
    %532 = vmatpush1.bf16.msra.mxu0 %v467
    %533 = vmatprep.subr.bf16.mxu0 %v470
    %534 = vmatpush1.bf16.msra.mxu0 %v469
    %535 = vmatprep.subr.bf16.mxu0 %v472
    %536 = vmatpush1.bf16.msra.mxu0 %v471
    %537 = vmatprep.subr.bf16.mxu0 %v474
    %538 = vmatpush1.bf16.msra.mxu0 %v473
    %539 = vmatprep.subr.bf16.mxu0 %v476
    %540 = vmatpush1.bf16.msra.mxu0 %v475
    %541 = vmatprep.subr.bf16.mxu0 %v478
    %542 = vmatpush1.bf16.msra.mxu0 %v477
    %543 = vmatprep.subr.bf16.mxu0 %v480
    %544 = vmatpush1.bf16.msra.mxu0 %v479
    %545 = vmatprep.subr.bf16.mxu0 %v482
    %546 = vmatpush1.bf16.msra.mxu0 %v481
    %547 = vmatprep.subr.bf16.mxu0 %v484
    %548 = vmatpush1.bf16.msra.mxu0 %v483
    %549 = vmatprep.subr.bf16.mxu0 %v486
    %550 = vmatpush1.bf16.msra.mxu0 %v485
    %551 = vmatprep.subr.bf16.mxu0 %v488
    %552 = vmatpush1.bf16.msra.mxu0 %v487
    %553 = vmatprep.mubr.bf16.mxu0 %v358
    %554 = vmatmul.mubr.bf16.gmra.mrb[0].mxu0 %v357
    %v555 = vpop.f32.mrb[0].mxu0
    %v556 = vadd.f32 %v348, %v555
    %v557 = vpop.f32.mrb[0].mxu0
    %v558 = vadd.f32 %v350, %v557
    %v559 = vpop.f32.mrb[0].mxu0
    %v560 = vpop.f32.mrb[0].mxu0
    %561 = vdwg.mxu0
    %v562 = vld [vmem:[%s4] sm:$0x3]
    %v564 = vlaneseq
    %v565 = vshrl.u32 %v564, 7
    %v566 = vsub.s32 0, %v565
    %v567 = vrot.slane %v562, %v566
    %v568 = vlaneseq
    %v569 = vshrl.u32 %v568, 7
    %v570 = vsub.s32 1, %v569
    %v571 = vrot.slane %v562, %v570
    %v574 = vadd.f32 %v556, %v567
    %v575 = vadd.f32 %v558, %v571
    %v576 = vmax.f32 %v574, 0.0
    %v577 = vmax.f32 %v575, 0.0
    %v578 = vpack.c.bf16 %v576, %v576
    %v579 = vpack.c.bf16 %v577, %v577
    %v580 = vld [vmem:[%s5] sm:$0xf]
    %v581 = vld [vmem:[%s5 + $0x4] sm:$0xf]
    %v582 = vld [vmem:[%s5 + $0x8] sm:$0xf]
    %v583 = vld [vmem:[%s5 + $0xc] sm:$0xf]
    %v584 = vld [vmem:[%s5 + $0x10] sm:$0xf]
    %v585 = vld [vmem:[%s5 + $0x14] sm:$0xf]
    %v586 = vld [vmem:[%s5 + $0x18] sm:$0xf]
    %v587 = vld [vmem:[%s5 + $0x1c] sm:$0xf]
    %v588 = vld [vmem:[%s5 + $0x20] sm:$0xf]
    %v589 = vld [vmem:[%s5 + $0x24] sm:$0xf]
    %v590 = vld [vmem:[%s5 + $0x28] sm:$0xf]
    %v591 = vld [vmem:[%s5 + $0x2c] sm:$0xf]
    %v592 = vld [vmem:[%s5 + $0x30] sm:$0xf]
    %v593 = vld [vmem:[%s5 + $0x34] sm:$0xf]
    %v594 = vld [vmem:[%s5 + $0x38] sm:$0xf]
    %v595 = vld [vmem:[%s5 + $0x3c] sm:$0xf]
    %v596 = vld [vmem:[%s5 + $0x40] sm:$0xf]
    %v597 = vld [vmem:[%s5 + $0x44] sm:$0xf]
    %v598 = vld [vmem:[%s5 + $0x48] sm:$0xf]
    %v599 = vld [vmem:[%s5 + $0x4c] sm:$0xf]
    %v600 = vld [vmem:[%s5 + $0x50] sm:$0xf]
    %v601 = vld [vmem:[%s5 + $0x54] sm:$0xf]
    %v602 = vld [vmem:[%s5 + $0x58] sm:$0xf]
    %v603 = vld [vmem:[%s5 + $0x5c] sm:$0xf]
    %v604 = vld [vmem:[%s5 + $0x60] sm:$0xf]
    %v605 = vld [vmem:[%s5 + $0x64] sm:$0xf]
    %v606 = vld [vmem:[%s5 + $0x68] sm:$0xf]
    %v607 = vld [vmem:[%s5 + $0x6c] sm:$0xf]
    %v608 = vld [vmem:[%s5 + $0x70] sm:$0xf]
    %v609 = vld [vmem:[%s5 + $0x74] sm:$0xf]
    %v610 = vld [vmem:[%s5 + $0x78] sm:$0xf]
    %v611 = vld [vmem:[%s5 + $0x7c] sm:$0xf]
    %v612 = vld [vmem:[%s6] sm:$0x1]
    %v614 = vlaneseq
    %v615 = vshrl.u32 %v614, 7
    %v616 = vsub.s32 0, %v615
    %v617 = vrot.slane %v612, %v616
    %v651 = vunpack.c.l.b16 %v580
    %v652 = vunpack.c.l.b16 %v581
    %v653 = vunpack.c.l.b16 %v582
    %v654 = vunpack.c.l.b16 %v583
    %v655 = vunpack.c.l.b16 %v584
    %v656 = vunpack.c.l.b16 %v585
    %v657 = vunpack.c.l.b16 %v586
    %v658 = vunpack.c.l.b16 %v587
    %v659 = vunpack.c.l.b16 %v588
    %v660 = vunpack.c.l.b16 %v589
    %v661 = vunpack.c.l.b16 %v590
    %v662 = vunpack.c.l.b16 %v591
    %v663 = vunpack.c.l.b16 %v592
    %v664 = vunpack.c.l.b16 %v593
    %v665 = vunpack.c.l.b16 %v594
    %v666 = vunpack.c.l.b16 %v595
    %v667 = vunpack.c.l.b16 %v596
    %v668 = vunpack.c.l.b16 %v597
    %v669 = vunpack.c.l.b16 %v598
    %v670 = vunpack.c.l.b16 %v599
    %v671 = vunpack.c.l.b16 %v600
    %v672 = vunpack.c.l.b16 %v601
    %v673 = vunpack.c.l.b16 %v602
    %v674 = vunpack.c.l.b16 %v603
    %v675 = vunpack.c.l.b16 %v604
    %v676 = vunpack.c.l.b16 %v605
    %v677 = vunpack.c.l.b16 %v606
    %v678 = vunpack.c.l.b16 %v607
    %v679 = vunpack.c.l.b16 %v608
    %v680 = vunpack.c.l.b16 %v609
    %v681 = vunpack.c.l.b16 %v610
    %v682 = vunpack.c.l.b16 %v611
    %v683 = vpack.c.b16 %v652, %v651
    %v684 = vpack.c.b16 %v654, %v653
    %v685 = vpack.c.b16 %v656, %v655
    %v686 = vpack.c.b16 %v658, %v657
    %v687 = vpack.c.b16 %v660, %v659
    %v688 = vpack.c.b16 %v662, %v661
    %v689 = vpack.c.b16 %v664, %v663
    %v690 = vpack.c.b16 %v666, %v665
    %v691 = vpack.c.b16 %v668, %v667
    %v692 = vpack.c.b16 %v670, %v669
    %v693 = vpack.c.b16 %v672, %v671
    %v694 = vpack.c.b16 %v674, %v673
    %v695 = vpack.c.b16 %v676, %v675
    %v696 = vpack.c.b16 %v678, %v677
    %v697 = vpack.c.b16 %v680, %v679
    %v698 = vpack.c.b16 %v682, %v681
    %715 = vmatprep.subr.bf16.mxu0 0
    %716 = vmatpush1.bf16.msra.mxu0 %v683
    %717 = vmatprep.subr.bf16.mxu0 0
    %718 = vmatpush1.bf16.msra.mxu0 %v684
    %719 = vmatprep.subr.bf16.mxu0 0
    %720 = vmatpush1.bf16.msra.mxu0 %v685
    %721 = vmatprep.subr.bf16.mxu0 0
    %722 = vmatpush1.bf16.msra.mxu0 %v686
    %723 = vmatprep.subr.bf16.mxu0 0
    %724 = vmatpush1.bf16.msra.mxu0 %v687
    %725 = vmatprep.subr.bf16.mxu0 0
    %726 = vmatpush1.bf16.msra.mxu0 %v688
    %727 = vmatprep.subr.bf16.mxu0 0
    %728 = vmatpush1.bf16.msra.mxu0 %v689
    %729 = vmatprep.subr.bf16.mxu0 0
    %730 = vmatpush1.bf16.msra.mxu0 %v690
    %731 = vmatprep.subr.bf16.mxu0 0
    %732 = vmatpush1.bf16.msra.mxu0 %v691
    %733 = vmatprep.subr.bf16.mxu0 0
    %734 = vmatpush1.bf16.msra.mxu0 %v692
    %735 = vmatprep.subr.bf16.mxu0 0
    %736 = vmatpush1.bf16.msra.mxu0 %v693
    %737 = vmatprep.subr.bf16.mxu0 0
    %738 = vmatpush1.bf16.msra.mxu0 %v694
    %739 = vmatprep.subr.bf16.mxu0 0
    %740 = vmatpush1.bf16.msra.mxu0 %v695
    %741 = vmatprep.subr.bf16.mxu0 0
    %742 = vmatpush1.bf16.msra.mxu0 %v696
    %743 = vmatprep.subr.bf16.mxu0 0
    %744 = vmatpush1.bf16.msra.mxu0 %v697
    %745 = vmatprep.subr.bf16.mxu0 0
    %746 = vmatpush1.bf16.msra.mxu0 %v698
    %747 = vmatprep.mubr.bf16.mxu0 %v579
    %748 = vmatmul.mubr.bf16.gmra.mrb[0].mxu0 %v578
    %v749 = vpop.f32.mrb[0].mxu0
    %v750 = vadd.f32 %v617, %v749
    %v751 = vpop.f32.mrb[0].mxu0
    %v752 = vpop.f32.mrb[0].mxu0
    %v753 = vpop.f32.mrb[0].mxu0
    %754 = vdwg.mxu0
    %v755 = vmax.f32 %v750, 0.0
    %v756 = vpack.c.bf16 %v755, %v755
    %v757 = vld [vmem:[%s7] sm:$0xf]
    %v758 = vld [vmem:[%s7 + $0x4] sm:$0xf]
    %v759 = vld [vmem:[%s7 + $0x8] sm:$0xf]
    %v760 = vld [vmem:[%s7 + $0xc] sm:$0xf]
    %v761 = vld [vmem:[%s7 + $0x10] sm:$0xf]
    %v762 = vld [vmem:[%s7 + $0x14] sm:$0xf]
    %v763 = vld [vmem:[%s7 + $0x18] sm:$0xf]
    %v764 = vld [vmem:[%s7 + $0x1c] sm:$0xf]
    %v765 = vld [vmem:[%s7 + $0x20] sm:$0xf]
    %v766 = vld [vmem:[%s7 + $0x24] sm:$0xf]
    %v767 = vld [vmem:[%s7 + $0x28] sm:$0xf]
    %v768 = vld [vmem:[%s7 + $0x2c] sm:$0xf]
    %v769 = vld [vmem:[%s7 + $0x30] sm:$0xf]
    %v770 = vld [vmem:[%s7 + $0x34] sm:$0xf]
    %v771 = vld [vmem:[%s7 + $0x38] sm:$0xf]
    %v772 = vld [vmem:[%s7 + $0x3c] sm:$0xf]
    %v773 = vld [vmem:[%s8] sm:$0x1]
    %v775 = vlaneseq
    %v776 = vshrl.u32 %v775, 7
    %v777 = vsub.s32 0, %v776
    %v778 = vrot.slane %v773, %v777
    %v796 = vunpack.c.l.b16 %v757
    %v797 = vunpack.c.l.b16 %v758
    %v798 = vunpack.c.l.b16 %v759
    %v799 = vunpack.c.l.b16 %v760
    %v800 = vunpack.c.l.b16 %v761
    %v801 = vunpack.c.l.b16 %v762
    %v802 = vunpack.c.l.b16 %v763
    %v803 = vunpack.c.l.b16 %v764
    %v804 = vunpack.c.l.b16 %v765
    %v805 = vunpack.c.l.b16 %v766
    %v806 = vunpack.c.l.b16 %v767
    %v807 = vunpack.c.l.b16 %v768
    %v808 = vunpack.c.l.b16 %v769
    %v809 = vunpack.c.l.b16 %v770
    %v810 = vunpack.c.l.b16 %v771
    %v811 = vunpack.c.l.b16 %v772
    %v812 = vpack.c.b16 %v797, %v796
    %v813 = vpack.c.b16 %v799, %v798
    %v814 = vpack.c.b16 %v801, %v800
    %v815 = vpack.c.b16 %v803, %v802
    %v816 = vpack.c.b16 %v805, %v804
    %v817 = vpack.c.b16 %v807, %v806
    %v818 = vpack.c.b16 %v809, %v808
    %v819 = vpack.c.b16 %v811, %v810
    %828 = vmatprep.subr.bf16.mxu0 0
    %829 = vmatpush1.bf16.msra.mxu0 %v812
    %830 = vmatprep.subr.bf16.mxu0 0
    %831 = vmatpush1.bf16.msra.mxu0 %v813
    %832 = vmatprep.subr.bf16.mxu0 0
    %833 = vmatpush1.bf16.msra.mxu0 %v814
    %834 = vmatprep.subr.bf16.mxu0 0
    %835 = vmatpush1.bf16.msra.mxu0 %v815
    %836 = vmatprep.subr.bf16.mxu0 0
    %837 = vmatpush1.bf16.msra.mxu0 %v816
    %838 = vmatprep.subr.bf16.mxu0 0
    %839 = vmatpush1.bf16.msra.mxu0 %v817
    %840 = vmatprep.subr.bf16.mxu0 0
    %841 = vmatpush1.bf16.msra.mxu0 %v818
    %842 = vmatprep.subr.bf16.mxu0 0
    %843 = vmatpush1.bf16.msra.mxu0 %v819
    %844 = vmatprep.subr.bf16.mxu0 0
    %845 = vmatpush1.bf16.msra.mxu0 0
    %846 = vmatprep.subr.bf16.mxu0 0
    %847 = vmatpush1.bf16.msra.mxu0 0
    %848 = vmatprep.subr.bf16.mxu0 0
    %849 = vmatpush1.bf16.msra.mxu0 0
    %850 = vmatprep.subr.bf16.mxu0 0
    %851 = vmatpush1.bf16.msra.mxu0 0
    %852 = vmatprep.subr.bf16.mxu0 0
    %853 = vmatpush1.bf16.msra.mxu0 0
    %854 = vmatprep.subr.bf16.mxu0 0
    %855 = vmatpush1.bf16.msra.mxu0 0
    %856 = vmatprep.subr.bf16.mxu0 0
    %857 = vmatpush1.bf16.msra.mxu0 0
    %858 = vmatprep.subr.bf16.mxu0 0
    %859 = vmatpush1.bf16.msra.mxu0 0
    %860 = vmatprep.mubr.bf16.mxu0 0
    %861 = vmatmul.mubr.bf16.gmra.mrb[0].mxu0 %v756
    %v862 = vpop.f32.mrb[0].mxu0
    %v863 = vadd.f32 %v778, %v862
    %v864 = vpop.f32.mrb[0].mxu0
    %v865 = vpop.f32.mrb[0].mxu0
    %v866 = vpop.f32.mrb[0].mxu0
    %867 = vdwg.mxu0
    %v868 = vmax.f32 %v863, 0.0
    %v869 = vld [vmem:[#allocation7] sm:$0x1]
    %v871 = vlaneseq
    %v872 = vshrl.u32 %v871, 7
    %v873 = vsub.s32 0, %v872
    %v874 = vrot.slane %v869, %v873
    %v876 = vmul.f32 %v868, %v874
    %877 = vadd.xlane.f32.xlu0 %v876
    %v878 = vpop.xlane.xlu0 %877
    %v879 = vld [vmem:[#allocation2] sm:$0x1]
    %v881 = vlaneseq
    %v882 = vshrl.u32 %v881, 7
    %v883 = vsub.s32 0, %v882
    %v884 = vrot.slane %v879, %v883
    %v886 = vadd.f32 %v878, %v884
    %vm887 = vcmask 7168
    %888 = vst.msk [vmem:[%s11] sm:$0xff] %vm887, %v886
    // Predicated region
    $region58: #{ncf_forward.1} parent=1 // pred_check
      _
    $region59: #{ncf_forward.1} parent=1 // pred_check_branch
      %890 = sbr.rel (0) target = $region61
    $region60: #{ncf_forward.1} parent=1 // pred_region
      _
    $region61: #{ncf_forward.1} parent=1 // pred_fallthru
      _
    // Predicated region
    $region62: #{ncf_forward.1} parent=1 // pred_check
      _
    $region63: #{ncf_forward.1} parent=1 // pred_check_branch
      %892 = sbr.rel (0) target = $region65
    $region64: #{ncf_forward.1} parent=1 // pred_region
      _
    $region65: #{ncf_forward.1} parent=1 // pred_fallthru
      _
    %893 = vsyncpa [#allocation4], 1
    %894 = vsyncpa [#allocation6], 1

</llo_original>
